<compile_context>
chip_gen: v5e
topology: v5e:2x2
jax: 0.10.0
libtpu: 0.0.40
codegen_flags: <defaults>
</compile_context>

<pallas_src>
import functools
import math

import jax
import jax.numpy as jnp
from jax import lax
from jax.experimental import pallas as pl
from jax.experimental.pallas import tpu as pltpu

NEG_INF = -1e30                   # finite "minus infinity"
VMEM_LIMIT = 48 * 1024 * 1024     # fits v5e/v6e (128 MiB) and v7x (64 MiB)


def _pick_block(total: int, target: int) -> int:
    """Largest tile <= target that evenly divides `total` (fallback: total)."""
    if total <= target:
        return total
    for cand in (target, target // 2, target // 4, 256, 128, 64, 32, 16, 8):
        if 0 < cand <= target and total % cand == 0:
            return cand
    return total


# ---------------------------------------------------------------------------
# Kernel 1: fused QKV projection   (rows, D) @ (D, 3D) + (1, 3D)
# ---------------------------------------------------------------------------
def qkv_proj_kernel(x_ref, w_ref, b_ref, o_ref):
    acc = jnp.dot(x_ref[...], w_ref[...], preferred_element_type=jnp.float32)
    o_ref[...] = (acc + b_ref[...]).astype(o_ref.dtype)


# ---------------------------------------------------------------------------
# Kernel 2: flash attention (online softmax) + fused output projection
# ---------------------------------------------------------------------------
def flash_attn_kernel(q_ref, k_ref, v_ref, wout_ref, bout_ref, o_ref,
                      m_sc, l_sc, acc_sc, out_acc,
                      *, block_q, block_kv, is_causal):
    qi = pl.program_id(1)            # query tile
    h = pl.program_id(2)             # head
    ki = pl.program_id(3)            # kv tile
    nh = pl.num_programs(2)
    nk = pl.num_programs(3)

    # Per-(batch, q-tile) output accumulator init.
    @pl.when(jnp.logical_and(h == 0, ki == 0))
    def _init_out():
        out_acc[...] = jnp.zeros(out_acc.shape, dtype=out_acc.dtype)

    # Per-(batch, q-tile, head) online-softmax state init.
    @pl.when(ki == 0)
    def _init_head():
        m_sc[...] = jnp.full(m_sc.shape, NEG_INF, dtype=m_sc.dtype)
        l_sc[...] = jnp.zeros(l_sc.shape, dtype=l_sc.dtype)
        acc_sc[...] = jnp.zeros(acc_sc.shape, dtype=acc_sc.dtype)

    def _update():
        q = q_ref[...]                                   # (block_q,  hd)
        k = k_ref[...]                                   # (block_kv, hd)
        v = v_ref[...]                                   # (block_kv, hd)

        # scores: contract head_dim directly -> no k.T is materialized.
        s = lax.dot_general(q, k, (((1,), (1,)), ((), ())),
                            preferred_element_type=jnp.float32)   # (bq, bkv)
        if is_causal:
            row = qi * block_q + lax.broadcasted_iota(jnp.int32, s.shape, 0)
            col = ki * block_kv + lax.broadcasted_iota(jnp.int32, s.shape, 1)
            s = jnp.where(col <= row, s, NEG_INF)

        m_prev = m_sc[...]
        m_new = jnp.maximum(m_prev, jnp.max(s, axis=-1, keepdims=True))
        alpha = jnp.exp(m_prev - m_new)
        p = jnp.exp(s - m_new)
        l_sc[...] = alpha * l_sc[...] + jnp.sum(p, axis=-1, keepdims=True)
        acc_sc[...] = alpha * acc_sc[...] + jnp.dot(
            p.astype(v.dtype), v, preferred_element_type=jnp.float32)
        m_sc[...] = m_new

    if is_causal:
        # Skip KV tiles strictly above the causal diagonal (fully masked).
        pl.when(ki * block_kv < (qi + 1) * block_q)(_update)
    else:
        _update()

    # Finalize this head: normalize and accumulate its slice of W_out.
    @pl.when(ki == nk - 1)
    def _finalize_head():
        inv_l = pl.reciprocal(l_sc[...], approx=True)             # EUP slot
        ctx_h = acc_sc[...] * inv_l                               # (bq, hd) f32
        out_acc[...] += jnp.dot(ctx_h.astype(wout_ref.dtype), wout_ref[...],
                                preferred_element_type=jnp.float32)

    # Last head & last kv tile: add bias and write the output block.
    @pl.when(jnp.logical_and(h == nh - 1, ki == nk - 1))
    def _write():
        o_ref[...] = (out_acc[...] + bout_ref[...]).astype(o_ref.dtype)


# ---------------------------------------------------------------------------
# Wrapper
# ---------------------------------------------------------------------------
def mhsa_pallas(x, w_qkv, b_qkv, w_out, b_out, *, num_heads, is_causal,
                block_q=256, block_kv=256, block_rows=512):
    B, T, D = x.shape
    head_dim = D // num_heads
    assert num_heads * head_dim == D

    block_rows = _pick_block(T, block_rows)
    block_q = _pick_block(T, block_q)
    block_kv = _pick_block(T, block_kv)

    # Fold the 1/sqrt(head_dim) attention scale into the Q projection
    # (scaling (T, hd) implicitly instead of every (T, T) score tile).
    scale = 1.0 / math.sqrt(head_dim)
    col_scale = jnp.concatenate([
        jnp.full((D,), scale, dtype=w_qkv.dtype),
        jnp.ones((2 * D,), dtype=w_qkv.dtype)])
    w_qkv_s = w_qkv * col_scale[None, :]
    b_qkv_s = b_qkv * col_scale[None, :]

    # --- Kernel 1: fused QKV projection ------------------------------------
    n_row = T // block_rows
    qkv = pl.pallas_call(
        qkv_proj_kernel,
        out_shape=jax.ShapeDtypeStruct((B, T, 3 * D), x.dtype),
        grid=(B, n_row),
        in_specs=[
            pl.BlockSpec((pl.Squeezed(), block_rows, D), lambda b, i: (b, i, 0)),
            pl.BlockSpec((D, 3 * D), lambda b, i: (0, 0)),
            pl.BlockSpec((1, 3 * D), lambda b, i: (0, 0)),
        ],
        out_specs=pl.BlockSpec((pl.Squeezed(), block_rows, 3 * D),
                               lambda b, i: (b, i, 0)),
        compiler_params=pltpu.CompilerParams(
            dimension_semantics=("parallel", "parallel"),
            vmem_limit_bytes=VMEM_LIMIT),
        cost_estimate=pl.CostEstimate(
            flops=2 * B * T * D * 3 * D,
            transcendentals=0,
            bytes_accessed=4 * (B * T * D + 3 * D * D + 3 * D + 3 * B * T * D)),
    )(x, w_qkv_s, b_qkv_s)

    # Wrapper-side layout plumbing (single XLA transpose, matches the PyTorch
    # .view(-1, T, H, hd).transpose(1, 2)):  (B, T, 3D) -> (3, B, H, T, hd).
    # The reshape is free (last-dim split); only one HBM copy for the transpose.
    qkv_t = qkv.reshape(B, T, 3, num_heads, head_dim).transpose(2, 0, 3, 1, 4)

    # --- Kernel 2: flash attention + fused output projection ---------------
    nq = T // block_q
    nkv = T // block_kv
    kernel = functools.partial(flash_attn_kernel, block_q=block_q,
                               block_kv=block_kv, is_causal=is_causal)

    causal_factor = 0.5 if is_causal else 1.0
    attn_flops = int(4 * B * num_heads * T * T * head_dim * causal_factor)

    out = pl.pallas_call(
        kernel,
        out_shape=jax.ShapeDtypeStruct((B, T, D), x.dtype),
        grid=(B, nq, num_heads, nkv),
        in_specs=[
            # q / k / v are the same stacked (3, B, H, T, hd) array selected
            # with a constant leading block index -> contiguous per-head DMAs.
            pl.BlockSpec((pl.Squeezed(), pl.Squeezed(), pl.Squeezed(),
                          block_q, head_dim),
                         lambda b, qi, h, ki: (0, b, h, qi, 0)),     # q
            pl.BlockSpec((pl.Squeezed(), pl.Squeezed(), pl.Squeezed(),
                          block_kv, head_dim),
                         lambda b, qi, h, ki: (1, b, h, ki, 0)),     # k
            pl.BlockSpec((pl.Squeezed(), pl.Squeezed(), pl.Squeezed(),
                          block_kv, head_dim),
                         lambda b, qi, h, ki: (2, b, h, ki, 0)),     # v
            pl.BlockSpec((head_dim, D), lambda b, qi, h, ki: (h, 0)),  # W_out[h]
            pl.BlockSpec((1, D), lambda b, qi, h, ki: (0, 0)),         # b_out
        ],
        out_specs=pl.BlockSpec((pl.Squeezed(), block_q, D),
                               lambda b, qi, h, ki: (b, qi, 0)),
        scratch_shapes=[
            pltpu.VMEM((block_q, 1), jnp.float32),            # running max m
            pltpu.VMEM((block_q, 1), jnp.float32),            # running sum l
            pltpu.VMEM((block_q, head_dim), jnp.float32),     # per-head acc
            pltpu.VMEM((block_q, D), jnp.float32),            # output accumulator
        ],
        compiler_params=pltpu.CompilerParams(
            dimension_semantics=("parallel", "parallel", "arbitrary", "arbitrary"),
            vmem_limit_bytes=VMEM_LIMIT),
        cost_estimate=pl.CostEstimate(
            flops=attn_flops + 2 * B * T * D * D,
            transcendentals=int(B * num_heads * T * T * causal_factor),
            bytes_accessed=4 * (3 * B * T * D + D * D + D + B * T * D)),
    )(qkv_t, qkv_t, qkv_t, w_out, b_out)
    return out


# ---------------------------------------------------------------------------
# Plain-JAX reference matching the PyTorch forward semantics
# ---------------------------------------------------------------------------
def mhsa_reference(x, w_qkv, b_qkv, w_out, b_out, *, num_heads, is_causal):
    B, T, D = x.shape
    hd = D // num_heads
    qkv = x @ w_qkv + b_qkv
    q, k, v = jnp.split(qkv, 3, axis=-1)
    q = q.reshape(B, T, num_heads, hd).transpose(0, 2, 1, 3)
    k = k.reshape(B, T, num_heads, hd).transpose(0, 2, 1, 3)
    v = v.reshape(B, T, num_heads, hd).transpose(0, 2, 1, 3)
    scores = jnp.einsum("bhqd,bhkd->bhqk", q, k) / math.sqrt(hd)
    if is_causal:
        mask = jnp.tril(jnp.ones((T, T), dtype=bool))
        scores = jnp.where(mask, scores, -jnp.inf)
    attn = jax.nn.softmax(scores, axis=-1)
    ctx = jnp.einsum("bhqk,bhkd->bhqd", attn, v)
    ctx = ctx.transpose(0, 2, 1, 3).reshape(B, T, D)
    return ctx @ w_out + b_out


if __name__ == "__main__":
    # Small config consistent with the module (TrafoConfig analogue).
    batch = 2
    ctx_size = 8        # T
    embed_dim = 32      # D
    num_heads = 4
    num_blocks = 2
    qkv_bias = True
    is_causal = True

    key = jax.random.PRNGKey(0)
    kx, kw1, kb1, kw2, kb2 = jax.random.split(key, 5)

    # Parameters stored as (in, out) = nn.Linear weight transposed.
    bound_qkv = 1.0 / math.sqrt(embed_dim)
    w_qkv = jax.random.uniform(kw1, (embed_dim, 3 * embed_dim),
                               minval=-bound_qkv, maxval=bound_qkv,
                               dtype=jnp.float32)
    b_qkv = (jax.random.uniform(kb1, (1, 3 * embed_dim),
                                minval=-bound_qkv, maxval=bound_qkv,
                                dtype=jnp.float32)
             if qkv_bias else jnp.zeros((1, 3 * embed_dim), jnp.float32))

    std_out = 0.02 / math.sqrt(2 * num_blocks)
    w_out = std_out * jax.random.normal(kw2, (embed_dim, embed_dim),
                                        dtype=jnp.float32)
    bound_out = 1.0 / math.sqrt(embed_dim)
    b_out = jax.random.uniform(kb2, (1, embed_dim),
                               minval=-bound_out, maxval=bound_out,
                               dtype=jnp.float32)

    x = jax.random.normal(kx, (batch, ctx_size, embed_dim), dtype=jnp.float32)

    out = mhsa_pallas(x, w_qkv, b_qkv, w_out, b_out,
                      num_heads=num_heads, is_causal=is_causal)
    out = jax.block_until_ready(out)

    ref = mhsa_reference(x, w_qkv, b_qkv, w_out, b_out,
                         num_heads=num_heads, is_causal=is_causal)
    assert out.shape == (batch, ctx_size, embed_dim)
    # approx=True reciprocal -> compare with a slightly relaxed tolerance.
    assert jnp.allclose(out, ref, atol=1e-3, rtol=1e-3), "mismatch vs reference"

    print("KERNEL_OK")
</pallas_src>

<mosaic_0001>
module attributes {stable_mosaic.version = 11 : i64} {
  func.func @qkv_proj_kernel(%arg0: i32, %arg1: i32, %arg2: memref<1x8x32xf32, #tpu.memory_space<vmem>>, %arg3: memref<32x96xf32, #tpu.memory_space<vmem>>, %arg4: memref<1x96xf32, #tpu.memory_space<vmem>>, %arg5: memref<1x8x96xf32, #tpu.memory_space<vmem>>) attributes {dimension_semantics = [#tpu.dimension_semantics<parallel>, #tpu.dimension_semantics<parallel>], iteration_bounds = array<i64: 2, 1>, scalar_prefetch = 0 : i64, scratch_operands = 0 : i64, tpu.core_type = #tpu.core_type<tc>, window_params = [{transform_indices = @transform_0, window_bounds = array<i64: 1, 8, 32>}, {pipeline_mode = #tpu.pipeline_mode<synchronous>, transform_indices = @transform_1, window_bounds = array<i64: 32, 96>}, {pipeline_mode = #tpu.pipeline_mode<synchronous>, transform_indices = @transform_2, window_bounds = array<i64: 1, 96>}, {transform_indices = @transform_3, window_bounds = array<i64: 1, 8, 96>}]} {
    %c0 = arith.constant 0 : index
    %c0_0 = arith.constant 0 : index
    %c0_1 = arith.constant 0 : index
    %0 = vector.load %arg2[%c0, %c0_0, %c0_1] : memref<1x8x32xf32, #tpu.memory_space<vmem>>, vector<1x8x32xf32>
    %1 = vector.shape_cast %0 : vector<1x8x32xf32> to vector<8x32xf32>
    %c0_2 = arith.constant 0 : index
    %c0_3 = arith.constant 0 : index
    %2 = vector.load %arg3[%c0_2, %c0_3] : memref<32x96xf32, #tpu.memory_space<vmem>>, vector<32x96xf32>
    %cst = arith.constant dense<0.000000e+00> : vector<8x96xf32>
    %3 = tpu.matmul %1, %2, %cst {dimension_numbers = #tpu.dot_dimension_numbers<[1], [0], [0], [1], [0, 0, 1, 1], [], []>} : vector<8x32xf32>, vector<32x96xf32>, vector<8x96xf32> -> vector<8x96xf32>
    %c0_4 = arith.constant 0 : index
    %c0_5 = arith.constant 0 : index
    %4 = vector.load %arg4[%c0_4, %c0_5] : memref<1x96xf32, #tpu.memory_space<vmem>>, vector<1x96xf32>
    %5 = vector.broadcast %4 : vector<1x96xf32> to vector<8x96xf32>
    %6 = arith.addf %3, %5 : vector<8x96xf32>
    %c0_6 = arith.constant 0 : index
    %c0_7 = arith.constant 0 : index
    %c0_8 = arith.constant 0 : index
    %7 = vector.load %arg5[%c0_6, %c0_7, %c0_8] : memref<1x8x96xf32, #tpu.memory_space<vmem>>, vector<1x8x96xf32>
    %8 = vector.shape_cast %7 : vector<1x8x96xf32> to vector<8x96xf32>
    %9 = vector.shape_cast %6 : vector<8x96xf32> to vector<1x8x96xf32>
    tpu.vector_store %arg5[%c0_6, %c0_7, %c0_8], %9 {strides = array<i32>} : memref<1x8x96xf32, #tpu.memory_space<vmem>>, vector<1x8x96xf32>,
    return
  }
  func.func @transform_0(%arg0: i32, %arg1: i32) -> (i32, i32, i32) {
    %c0_i32 = arith.constant 0 : i32
    %c0_i32_0 = arith.constant 0 : i32
    return %arg0, %arg1, %c0_i32 : i32, i32, i32
  }
  func.func @transform_1(%arg0: i32, %arg1: i32) -> (i32, i32) {
    %c0_i32 = arith.constant 0 : i32
    %c0_i32_0 = arith.constant 0 : i32
    %c0_i32_1 = arith.constant 0 : i32
    return %c0_i32, %c0_i32_0 : i32, i32
  }
  func.func @transform_2(%arg0: i32, %arg1: i32) -> (i32, i32) {
    %c0_i32 = arith.constant 0 : i32
    %c0_i32_0 = arith.constant 0 : i32
    %c0_i32_1 = arith.constant 0 : i32
    return %c0_i32, %c0_i32_0 : i32, i32
  }
  func.func @transform_3(%arg0: i32, %arg1: i32) -> (i32, i32, i32) {
    %c0_i32 = arith.constant 0 : i32
    %c0_i32_0 = arith.constant 0 : i32
    return %arg0, %arg1, %c0_i32 : i32, i32, i32
  }
}

</mosaic_0001>

<llo_original>
// kernel: tpu_custom_call.1
$region0: #{tpu_custom_call.1}
  #allocation0 [shape = 'u32[]', space=smem, size = 0x4, offset = 0x4, fixed_abs, tag = 'smem constant byte address 0x4 - core index']
  #allocation1 [shape = 'u32[72,128]{1,0:T(1,128)}', space=vmem, size = 0x9000, scoped, tag = 'internal scratch']
  %s0 = inlined_call_operand.hbm [shape: f32[2,8,32], index: 0, kind: input, shape index: {}]
  %s1 = inlined_call_operand.hbm [shape: f32[32,96], index: 1, kind: input, shape index: {}]
  %s2 = inlined_call_operand.vmem [shape: f32[1,96], index: 2, kind: input, shape index: {}]
  %s3 = inlined_call_operand.hbm [shape: f32[2,8,96], index: 3, kind: output, shape index: {}]
  %s4 = sld [smem:[#allocation0]]
  $region53: #{tpu_custom_call.1} parent=0
    _
  %s6 = ssub.s32 1, %s4
  %s7 = scalar_select 0, %s6, %s4
  $region1: #{tpu_custom_call.1} parent=0
    #allocation2 [shape = 'u8[8192]{0}', space=vmem, size = 0x2000, scoped, tag = 'input window, operand 0']
    #allocation3 [shape = 's32[2]{0}', space=sflag, size = 0x8, scoped, tag = 'scoped memory for tpu_custom_call.1']
    #allocation4 [shape = 's32[2]{0}', space=sflag, size = 0x8, scoped, tag = 'scoped memory for tpu_custom_call.1']
    #allocation5 [shape = 'u8[16384]{0}', space=vmem, size = 0x4000, scoped, tag = 'input window, operand 1, single buffered']
    #allocation6 [shape = 's32[1]{0}', space=sflag, size = 0x4, scoped, tag = 'scoped memory for tpu_custom_call.1']
    #allocation7 [shape = 'u8[8192]{0}', space=vmem, size = 0x2000, scoped, tag = 'output window, operand 0']
    %8 = vsyncpa [#allocation3], 0
    %s9 = scalar_lea.sflag [#allocation3], 1
    %10 = vsyncpa %s9, 0
    %11 = vsyncpa [#allocation6], 0
    %12 = vsyncpa [#allocation4], 0
    %s13 = scalar_lea.sflag [#allocation4], 1
    %14 = vsyncpa %s13, 0
    loop: start=0, step=1, limit=4
    $region2: #{tpu_custom_call.1} parent=1 // loop_pre_header
      _
    $region3: #{tpu_custom_call.1} parent=1 // loop_header
      %s16 = sphi 0, %s20
      %p17 = scmp.ge.s32.totalorder %s16, 4
      %s23 = sphi 0, %s35
      %s24 = sphi 0, %s31
      %s25 = sphi 0, %s23
      %s26 = sphi 0, %s24
      %s27 = sphi 0, %s25
      %s28 = sphi 0, %s26
      %s40 = sphi 0, %s42
      %s43 = sphi 0, %s40
      %s44 = sphi 0, %s43
      %s60 = sphi 0, %s44
      %s64 = sphi 0, %s64
      %s66 = sphi 0, %s64
      %s67 = sphi 0, %s66
      %s81 = sphi 0, %s67
      %s85 = sphi 0, %s85
      %s87 = sphi 0, %s85
      %s88 = sphi 0, %s87
      %s102 = sphi 0, %s88
      %s110 = sphi 0, %s112
      %s113 = sphi 0, %s110
      %s114 = sphi 0, %s113
      %s130 = sphi 0, %s114
    $region4: #{tpu_custom_call.1} parent=1 // loop_header_branch
      %19 = sbr.rel (%p17) target = $region8
    $region5: #{tpu_custom_call.1} parent=1 // loop_body
      %s21 = ssub.s32 %s16, 1
      %s22 = ssub.s32 %s16, 2
      %s29 = sadd.s32 1, %s24
      %p30 = scmp.ge.s32.totalorder %s29, 1
      %s31 = scalar_select %p30, 0, %s29
      %s32 = sadd.s32 1, %s23
      %s33 = scalar_select %p30, %s32, %s23
      %p34 = scmp.ge.s32.totalorder %s33, 2
      %s35 = scalar_select %p34, 0, %s33
      %s36 = ssub.s32 %s23, %s35
      %s37 = ssub.s32 %s24, %s31
      %s38 = sor.u32 %s36, %s37
      %p39 = scmp.eq.s32.totalorder %s38, 0
      %s41 = sadd.s32 %s40, 1
      %s42 = scalar_select %p39, %s40, %s41
      %p45 = pneg %p39
      %p46 = scmp.eq.s32.totalorder %s16, 1
      %p47 = por %p45, %p46
      %p48 = scmp.ne.s32.totalorder %s40, %s43
      %p49 = scmp.eq.s32.totalorder %s16, 0
      %p50 = por %p48, %p49
      %p51 = scmp.ne.s32.totalorder %s40, %s43
      %p52 = scmp.eq.s32.totalorder %s21, 1
      %p53 = por %p51, %p52
      %p54 = scmp.ne.s32.totalorder %s43, %s44
      %p55 = scmp.eq.s32.totalorder %s21, 0
      %p56 = por %p54, %p55
      %p57 = scmp.ne.s32.totalorder %s43, %s44
      %p58 = scmp.eq.s32.totalorder %s22, 1
      %p59 = por %p57, %p58
      %p61 = scmp.ne.s32.totalorder %s44, %s60
      %p62 = scmp.eq.s32.totalorder %s22, 0
      %p63 = por %p61, %p62
      %s65 = sadd.s32 %s64, 1
      %p68 = scmp.eq.s32.totalorder %s16, 1
      %p69 = scmp.ne.s32.totalorder %s64, %s66
      %p70 = scmp.eq.s32.totalorder %s16, 0
      %p71 = por %p69, %p70
      %p72 = scmp.ne.s32.totalorder %s64, %s66
      %p73 = scmp.eq.s32.totalorder %s21, 1
      %p74 = por %p72, %p73
      %p75 = scmp.ne.s32.totalorder %s66, %s67
      %p76 = scmp.eq.s32.totalorder %s21, 0
      %p77 = por %p75, %p76
      %p78 = scmp.ne.s32.totalorder %s66, %s67
      %p79 = scmp.eq.s32.totalorder %s22, 1
      %p80 = por %p78, %p79
      %p82 = scmp.ne.s32.totalorder %s67, %s81
      %p83 = scmp.eq.s32.totalorder %s22, 0
      %p84 = por %p82, %p83
      %s86 = sadd.s32 %s85, 1
      %p89 = scmp.eq.s32.totalorder %s16, 1
      %p90 = scmp.ne.s32.totalorder %s85, %s87
      %p91 = scmp.eq.s32.totalorder %s16, 0
      %p92 = por %p90, %p91
      %p93 = scmp.ne.s32.totalorder %s85, %s87
      %p94 = scmp.eq.s32.totalorder %s21, 1
      %p95 = por %p93, %p94
      %p96 = scmp.ne.s32.totalorder %s87, %s88
      %p97 = scmp.eq.s32.totalorder %s21, 0
      %p98 = por %p96, %p97
      %p99 = scmp.ne.s32.totalorder %s87, %s88
      %p100 = scmp.eq.s32.totalorder %s22, 1
      %p101 = por %p99, %p100
      %p103 = scmp.ne.s32.totalorder %s88, %s102
      %p104 = scmp.eq.s32.totalorder %s22, 0
      %p105 = por %p103, %p104
      %s106 = ssub.s32 %s23, %s35
      %s107 = ssub.s32 %s24, %s31
      %s108 = sor.u32 %s106, %s107
      %p109 = scmp.eq.s32.totalorder %s108, 0
      %s111 = sadd.s32 %s110, 1
      %s112 = scalar_select %p109, %s110, %s111
      %p115 = pneg %p109
      %p116 = scmp.eq.s32.totalorder %s16, 1
      %p117 = por %p115, %p116
      %p118 = scmp.ne.s32.totalorder %s110, %s113
      %p119 = scmp.eq.s32.totalorder %s16, 0
      %p120 = por %p118, %p119
      %p121 = scmp.ne.s32.totalorder %s110, %s113
      %p122 = scmp.eq.s32.totalorder %s21, 1
      %p123 = por %p121, %p122
      %p124 = scmp.ne.s32.totalorder %s113, %s114
      %p125 = scmp.eq.s32.totalorder %s21, 0
      %p126 = por %p124, %p125
      %p127 = scmp.ne.s32.totalorder %s113, %s114
      %p128 = scmp.eq.s32.totalorder %s22, 1
      %p129 = por %p127, %p128
      %p131 = scmp.ne.s32.totalorder %s114, %s130
      %p132 = scmp.eq.s32.totalorder %s22, 0
      %p133 = por %p131, %p132
      %p134 = scmp.le.s32.totalorder 1, %s16
      %p135 = scmp.lt.s32.totalorder %s16, 3
      %p136 = pnand %p134, %p135
      %p137 = pneg %p136
      // Predicated region
      $region9: #{tpu_custom_call.1} parent=5 // pred_check
        _
      $region10: #{tpu_custom_call.1} parent=5 // pred_check_branch
        %139 = sbr.rel (%p136) target = $region12
      $region11: #{tpu_custom_call.1} parent=5 // pred_region
        %s140 = ssub.s32 %s16, 1
        // Predicated region
        $region13: #{tpu_custom_call.1} parent=11 // pred_check
          %p141 = pneg %p77
        $region14: #{tpu_custom_call.1} parent=11 // pred_check_branch
          %143 = sbr.rel (%p141) target = $region16
        $region15: #{tpu_custom_call.1} parent=11 // pred_region
          %145 = vsyncadd [#allocation6], 0
          %s146 = sshll.u32 %s1, 4
          %s147 = int_to_ptr.hbm [resolvable:$true] %s146
          %s148 = sshll.u32 [#allocation5], 4
          %s149 = int_to_ptr.vmem [resolvable:$true] %s148
          %154 = dma.hbm_to_vmem [thread:$0]  %s147, 512, %s149, [#allocation6], 128, 128, 8
        $region16: #{tpu_custom_call.1} parent=11 // pred_fallthru
          _
        // Predicated region
        $region17: #{tpu_custom_call.1} parent=11 // pred_check
          %p155 = pneg %p98
        $region18: #{tpu_custom_call.1} parent=11 // pred_check_branch
          %157 = sbr.rel (%p155) target = $region20
        $region19: #{tpu_custom_call.1} parent=11 // pred_region
          _
        $region20: #{tpu_custom_call.1} parent=11 // pred_fallthru
          _
      $region12: #{tpu_custom_call.1} parent=5 // pred_fallthru
        _
      %p158 = scmp.lt.s32.totalorder %s16, 2
      // Predicated region
      $region21: #{tpu_custom_call.1} parent=5 // pred_check
        %p159 = pneg %p158
      $region22: #{tpu_custom_call.1} parent=5 // pred_check_branch
        %161 = sbr.rel (%p159) target = $region24
      $region23: #{tpu_custom_call.1} parent=5 // pred_region
        // Predicated region
        $region25: #{tpu_custom_call.1} parent=23 // pred_check
          %p162 = pneg %p50
        $region26: #{tpu_custom_call.1} parent=23 // pred_check_branch
          %164 = sbr.rel (%p162) target = $region28
        $region27: #{tpu_custom_call.1} parent=23 // pred_region
          %s165 = sand.u32 %s40, 1
          %s166 = scalar_lea.sflag [#allocation3], %s165
          %s167 = sand.u32 %s40, 1
          %s168 = smul.addr %s167, 8
          %s169 = scalar_lea.vmem [#allocation2], %s168
          %171 = vsyncadd %s166, 0
          %s172 = sadd.s32 %s24, %s23
          %s173 = smul.addr %s172, 8
          %s174 = scalar_lea.hbm %s0, %s173
          %s176 = sshll.u32 %s174, 4
          %s177 = int_to_ptr.hbm [resolvable:$true] %s176
          %s178 = sshll.u32 %s169, 4
          %s179 = int_to_ptr.vmem [resolvable:$true] %s178
          %181 = dma.hbm_to_vmem [thread:$0]  %s177, 128, %s179, %s166
        $region28: #{tpu_custom_call.1} parent=23 // pred_fallthru
          _
      $region24: #{tpu_custom_call.1} parent=5 // pred_fallthru
        _
      %p182 = scmp.le.s32.totalorder 1, %s16
      %p183 = scmp.lt.s32.totalorder %s16, 3
      %p184 = pnand %p182, %p183
      %p185 = pneg %p184
      // Predicated region
      $region29: #{tpu_custom_call.1} parent=5 // pred_check
        _
      $region30: #{tpu_custom_call.1} parent=5 // pred_check_branch
        %187 = sbr.rel (%p184) target = $region32
      $region31: #{tpu_custom_call.1} parent=5 // pred_region
        %s188 = ssub.s32 %s16, 1
        %s189 = sand.u32 %s43, 1
        %s190 = scalar_lea.sflag [#allocation3], %s189
        %s191 = sand.u32 %s43, 1
        %s192 = smul.addr %s191, 8
        %s193 = scalar_lea.vmem [#allocation2], %s192
        // Predicated region
        $region33: #{tpu_custom_call.1} parent=31 // pred_check
          %p194 = pneg %p56
        $region34: #{tpu_custom_call.1} parent=31 // pred_check_branch
          %196 = sbr.rel (%p194) target = $region36
        $region35: #{tpu_custom_call.1} parent=31 // pred_region
          %198 = dma.done %s190, 128
        $region36: #{tpu_custom_call.1} parent=31 // pred_fallthru
          _
        // Predicated region
        $region37: #{tpu_custom_call.1} parent=31 // pred_check
          %p199 = pneg %p77
        $region38: #{tpu_custom_call.1} parent=31 // pred_check_branch
          %201 = sbr.rel (%p199) target = $region40
        $region39: #{tpu_custom_call.1} parent=31 // pred_region
          %203 = dma.done [#allocation6], 512
        $region40: #{tpu_custom_call.1} parent=31 // pred_fallthru
          _
        %s204 = sand.u32 %s43, 1
        %s205 = scalar_lea.sflag [#allocation3], %s204
        %s206 = sand.u32 %s43, 1
        %s207 = smul.addr %s206, 8
        %s208 = scalar_lea.vmem [#allocation2], %s207
        %p209 = pneg %p56
        %p210 = pneg %p53
        %p211 = pneg %p77
        %p212 = pneg %p74
        %p213 = pneg %p98
        %p214 = pneg %p95
        %p215 = pneg %p126
        %p216 = pneg %p123
        %s217 = sand.u32 %s113, 1
        %s218 = scalar_lea.sflag [#allocation4], %s217
        %s219 = sand.u32 %s113, 1
        %s220 = smul.addr %s219, 8
        %s221 = scalar_lea.vmem [#allocation7], %s220
        %v222 = vld [vmem:[%s193] sm:$0xff]
        %v223 = vld [vmem:[#allocation5] sm:$0xff]
        %v224 = vld [vmem:[#allocation5 + $0x8] sm:$0xff]
        %v225 = vld [vmem:[#allocation5 + $0x10] sm:$0xff]
        %v226 = vld [vmem:[#allocation5 + $0x18] sm:$0xff]
        %v227 = vld [vmem:[%s2] sm:$0x1]
        %v229 = vperm.slane %v227, 0
        %vm231 = vcmask 261120
        %v233 = vsel %vm231, %v222, 0
        %235 = vmatpush.msra.mxu0 0.0
        %236 = vmatpush.msra.mxu0 0.0
        %237 = vmatpush.msra.mxu0 0.0
        %238 = vmatpush.msra.mxu0 0.0
        %239 = vmatpush.msra.mxu0 0.0
        %240 = vmatpush.msra.mxu0 0.0
        %241 = vmatpush.msra.mxu0 0.0
        %242 = vmatpush.msra.mxu0 0.0
        %243 = vmatpush.msra.mxu0 0.0
        %244 = vmatpush.msra.mxu0 0.0
        %245 = vmatpush.msra.mxu0 0.0
        %246 = vmatpush.msra.mxu0 0.0
        %247 = vmatpush.msra.mxu0 %v226
        %248 = vmatpush.msra.mxu0 %v225
        %249 = vmatpush.msra.mxu0 %v224
        %250 = vmatpush.msra.mxu0 %v223
        %251 = vmatmul.f32.gmra.mxu0 %v233
        %v252 = vpop.f32.mrf.mxu0
        %v253 = vadd.f32 %v229, %v252
        %254 = vdwg.mxu0
        %vm255 = vcmask 785408
        %256 = vst.msk [vmem:[%s221] sm:$0xff] %vm255, %v253
        %s257 = sand.u32 %s113, 1
        %s258 = scalar_lea.sflag [#allocation4], %s257
        %s259 = sand.u32 %s113, 1
        %s260 = smul.addr %s259, 8
        %s261 = scalar_lea.vmem [#allocation7], %s260
        // Predicated region
        $region41: #{tpu_custom_call.1} parent=31 // pred_check
          %p262 = pneg %p123
        $region42: #{tpu_custom_call.1} parent=31 // pred_check_branch
          %264 = sbr.rel (%p262) target = $region44
        $region43: #{tpu_custom_call.1} parent=31 // pred_region
          %266 = vsyncadd %s258, 0
          %s267 = sadd.s32 %s26, %s25
          %s268 = smul.addr %s267, 8
          %s269 = scalar_lea.hbm %s3, %s268
          %s271 = sshll.u32 %s261, 4
          %s272 = int_to_ptr.vmem [resolvable:$true] %s271
          %s273 = sshll.u32 %s269, 4
          %s274 = int_to_ptr.hbm [resolvable:$true] %s273
          %276 = dma.vmem_to_hbm [thread:$0]  %s272, 128, %s274, %s258
        $region44: #{tpu_custom_call.1} parent=31 // pred_fallthru
          _
      $region32: #{tpu_custom_call.1} parent=5 // pred_fallthru
        _
      %p277 = scmp.le.s32.totalorder 2, %s16
      // Predicated region
      $region45: #{tpu_custom_call.1} parent=5 // pred_check
        %p278 = pneg %p277
      $region46: #{tpu_custom_call.1} parent=5 // pred_check_branch
        %280 = sbr.rel (%p278) target = $region48
      $region47: #{tpu_custom_call.1} parent=5 // pred_region
        %s281 = ssub.s32 %s16, 2
        // Predicated region
        $region49: #{tpu_custom_call.1} parent=47 // pred_check
          %p282 = pneg %p129
        $region50: #{tpu_custom_call.1} parent=47 // pred_check_branch
          %284 = sbr.rel (%p282) target = $region52
        $region51: #{tpu_custom_call.1} parent=47 // pred_region
          %s285 = sand.u32 %s114, 1
          %s286 = scalar_lea.sflag [#allocation4], %s285
          %s287 = sand.u32 %s114, 1
          %s288 = smul.addr %s287, 8
          %s289 = scalar_lea.vmem [#allocation7], %s288
          %291 = dma.done %s286, 128
        $region52: #{tpu_custom_call.1} parent=47 // pred_fallthru
          _
      $region48: #{tpu_custom_call.1} parent=5 // pred_fallthru
        _
    $region6: #{tpu_custom_call.1} parent=1 // loop_footer
      %s20 = sadd.s32 1, %s16
    $region7: #{tpu_custom_call.1} parent=1 // loop_footer_branch
      %15 = sbr.rel target = $region3
    $region8: #{tpu_custom_call.1} parent=1 // loop_exit
      _
    %292 = vsyncpa [#allocation3], 1
    %s293 = scalar_lea.sflag [#allocation3], 1
    %294 = vsyncpa %s293, 1
    %295 = vsyncpa [#allocation6], 1
    %296 = vsyncpa [#allocation4], 1
    %s297 = scalar_lea.sflag [#allocation4], 1
    %298 = vsyncpa %s297, 1

</llo_original>
